<compile_context>
chip_gen: v5e
topology: v5e:2x2
jax: 0.10.0
libtpu: 0.0.40
codegen_flags: <defaults>
</compile_context>

<pallas_src>
import functools

import jax
import jax.numpy as jnp
from jax.experimental import pallas as pl
from jax.experimental.pallas import tpu as pltpu


# ----------------------------- VMEM budgeting -----------------------------

def _vmem_capacity_bytes() -> int:
    """Physical per-core VMEM (128 MiB v5e/v6e, 64 MiB v7x); conservative fallback."""
    try:
        return int(pltpu.get_tpu_info().vmem_capacity_bytes)
    except Exception:
        return 64 * 1024 * 1024


def _pick_vmem_limit(capacity_bytes: int) -> int:
    # Leave >=16 MiB for compiler scratch; cap scoped VMEM at 96 MiB.
    # v7x (64 MiB phys) -> 48 MiB; v5e/v6e (128 MiB phys) -> 96 MiB.
    return int(max(32 * 1024 * 1024, min(capacity_bytes - (16 << 20), 96 << 20)))


def _pick_block_cls(n_cls: int, seq_len: int, ctx_dim: int, vmem_limit_bytes: int) -> int:
    # Residency in the hot (assembly) kernel: double-buffered base input + double-buffered
    # prompts output = 4 class tiles, plus the tiny double-buffered ctx slab + slack.
    bytes_per_class = seq_len * ctx_dim * 2          # bf16
    slab_bytes = 2 * seq_len * ctx_dim * 2           # double-buffered ctx slab
    slack = 4 * 1024 * 1024
    tile_budget = max(vmem_limit_bytes - slab_bytes - slack, 4 * bytes_per_class)
    block_cls = tile_budget // (4 * bytes_per_class)
    return int(max(1, min(n_cls, block_cls)))


# ----------------------------- Pallas kernels -----------------------------

def _assemble_kernel(base_ref, slab_ref, out_ref):
    # base has exactly-zero ctx rows; slab is zero outside rows [1, 1+n_ctx).
    # One full-tile VPU add + one unmasked lane-dense store -> mem-bound copy at roofline.
    out_ref[...] = base_ref[...] + slab_ref[...]


def _make_matmul_kernel(depth_m1: int):
    def kernel(ctx_ref, pw_ref, pb_ref, *rest):
        if depth_m1 > 0:
            imgp_ref, cw_ref, cb_ref, shared_ref, deep_ref = rest
        else:
            (shared_ref,) = rest

        # shared_ctx = ctx @ W_proj^T + b   (bf16 operands, f32 accumulate)
        acc = jnp.dot(ctx_ref[...], pw_ref[...], preferred_element_type=jnp.float32)
        shared_ref[...] = (acc + pb_ref[...].astype(jnp.float32)).astype(shared_ref.dtype)

        # text_deep_prompts[l] = compound_prompts_image[l] @ W_l^T + b_l   (f32)
        for l in range(depth_m1):                    # static unroll over the few layers
            y = jnp.dot(imgp_ref[l], cw_ref[l], preferred_element_type=jnp.float32)
            deep_ref[l] = (y + cb_ref[l]).astype(deep_ref.dtype)

    return kernel


@functools.partial(jax.jit, static_argnames=("block_cls", "vmem_limit_bytes"))
def fused_forward(base, ctx, proj_w_t, proj_b, img_prompts, comp_w_t, comp_b,
                  *, block_cls, vmem_limit_bytes):
    """Two pallas_calls: a class-tiled prompt-assembly copy and a one-shot matmul micro-kernel."""
    n_cls, seq_len, ctx_dim = base.shape
    n_ctx = ctx.shape[0]
    vis_dim = proj_w_t.shape[1]
    depth_m1 = 0 if comp_w_t is None else comp_w_t.shape[0]

    # Learned ctx rows placed at sequence offset 1 in a tiny slab (fuses into this jit);
    # zero everywhere else, which is what makes the in-kernel add bit-exact.
    ctx_slab = jax.lax.dynamic_update_slice(
        jnp.zeros((seq_len, ctx_dim), base.dtype), ctx.astype(base.dtype), (1, 0))

    # ---- hot kernel: prompt assembly, class-tiled, embarrassingly parallel ----
    prompts = pl.pallas_call(
        _assemble_kernel,
        out_shape=jax.ShapeDtypeStruct((n_cls, seq_len, ctx_dim), base.dtype),
        grid_spec=pltpu.PrefetchScalarGridSpec(
            num_scalar_prefetch=0,
            grid=(pl.cdiv(n_cls, block_cls),),
            in_specs=[
                pl.BlockSpec((block_cls, seq_len, ctx_dim), lambda i: (i, 0, 0)),
                pl.BlockSpec((seq_len, ctx_dim), lambda i: (0, 0)),
            ],
            out_specs=pl.BlockSpec((block_cls, seq_len, ctx_dim), lambda i: (i, 0, 0)),
        ),
        compiler_params=pltpu.CompilerParams(
            # Each class block is independent -> safe to shard across v7x's 2 TensorCores.
            dimension_semantics=("parallel",),
            vmem_limit_bytes=vmem_limit_bytes,
        ),
    )(base, ctx_slab)

    # ---- cold kernel: the tiny matmuls (proj + deep-prompt linears), one shot ----
    in_specs = [
        pl.BlockSpec((n_ctx, ctx_dim), lambda i: (0, 0)),         # ctx
        pl.BlockSpec((ctx_dim, vis_dim), lambda i: (0, 0)),       # proj W^T
        pl.BlockSpec((1, vis_dim), lambda i: (0, 0)),             # proj b
    ]
    out_specs = [pl.BlockSpec((n_ctx, vis_dim), lambda i: (0, 0))]
    out_shapes = [jax.ShapeDtypeStruct((n_ctx, vis_dim), base.dtype)]
    args = [ctx, proj_w_t, proj_b]
    if depth_m1 > 0:
        in_specs += [
            pl.BlockSpec((depth_m1, n_ctx, vis_dim), lambda i: (0, 0, 0)),    # stacked image prompts
            pl.BlockSpec((depth_m1, vis_dim, ctx_dim), lambda i: (0, 0, 0)),  # stacked layer weights
            pl.BlockSpec((depth_m1, 1, ctx_dim), lambda i: (0, 0, 0)),        # stacked layer biases
        ]
        out_specs.append(pl.BlockSpec((depth_m1, n_ctx, ctx_dim), lambda i: (0, 0, 0)))
        out_shapes.append(jax.ShapeDtypeStruct((depth_m1, n_ctx, ctx_dim), jnp.float32))
        args += [img_prompts, comp_w_t, comp_b]

    mm_outs = pl.pallas_call(
        _make_matmul_kernel(depth_m1),
        out_shape=tuple(out_shapes),
        grid_spec=pltpu.PrefetchScalarGridSpec(
            num_scalar_prefetch=0,
            grid=(1,),
            in_specs=in_specs,
            out_specs=tuple(out_specs),
        ),
        compiler_params=pltpu.CompilerParams(
            dimension_semantics=("arbitrary",),
            vmem_limit_bytes=vmem_limit_bytes,
        ),
    )(*args)

    if depth_m1 > 0:
        shared_ctx, deep = mm_outs
    else:
        shared_ctx, deep = mm_outs[0], None
    return prompts, shared_ctx, deep


# ----------------------------- Module wrapper -----------------------------

class MultiModalPromptLearnerPallas:
    def __init__(self, key, *, n_cls, n_ctx, ctx_dim, vis_dim, seq_len, prompt_depth,
                 block_cls=None):
        assert prompt_depth >= 1
        assert seq_len > 1 + n_ctx
        self.n_cls = n_cls
        self.n_ctx = n_ctx
        self.ctx_dim = ctx_dim
        self.compound_prompts_depth = prompt_depth
        d1 = prompt_depth - 1

        keys = jax.random.split(key, 5 + 3 * max(d1, 1))

        # ctx vectors (half precision in torch -> bf16 on TPU), std=0.02 init.
        self.ctx = (0.02 * jax.random.normal(keys[0], (n_ctx, ctx_dim))).astype(jnp.bfloat16)

        # TODO(synk): CLIP tokenizer + token_embedding (constructor-only) have no Pallas
        # equivalent; token_prefix/token_suffix are stand-in deterministic random embeddings.
        self.token_prefix = jax.random.normal(
            keys[1], (n_cls, 1, ctx_dim)).astype(jnp.bfloat16)
        self.token_suffix = jax.random.normal(
            keys[2], (n_cls, seq_len - 1 - n_ctx, ctx_dim)).astype(jnp.bfloat16)

        # Static prompt scaffold assembled ONCE: [prefix | <zero ctx rows> | suffix].
        # The forward kernel only has to add the learned ctx rows per class tile.
        self.prompts_base = jnp.concatenate(
            [self.token_prefix,
             jnp.zeros((n_cls, n_ctx, ctx_dim), jnp.bfloat16),
             self.token_suffix], axis=1)
        # Invariant required for the add-based assembly to be bit-exact.
        assert bool(jnp.all(self.prompts_base[:, 1:1 + n_ctx, :] == 0))

        # proj = nn.Linear(ctx_dim, 768).half()   (W stored transposed: (in, out))
        self.proj_w_t = (jax.random.normal(keys[3], (ctx_dim, vis_dim))
                         / jnp.sqrt(ctx_dim)).astype(jnp.bfloat16)
        self.proj_b = (0.01 * jax.random.normal(keys[4], (1, vis_dim))).astype(jnp.bfloat16)

        # compound_prompts_image: (depth-1) params of shape (n_ctx, vis_dim), f32.
        self.compound_prompts_image = [
            (0.02 * jax.random.normal(keys[5 + i], (n_ctx, vis_dim))).astype(jnp.float32)
            for i in range(d1)
        ]
        # compound_prompt_projections: clones of nn.Linear(vis_dim, ctx_dim), f32.
        self.comp_w_t = [
            (jax.random.normal(keys[5 + d1 + i], (vis_dim, ctx_dim))
             / jnp.sqrt(vis_dim)).astype(jnp.float32)
            for i in range(d1)
        ]
        self.comp_b = [
            (0.01 * jax.random.normal(keys[5 + 2 * d1 + i], (1, ctx_dim))).astype(jnp.float32)
            for i in range(d1)
        ]

        # Stacked copies feeding the matmul micro-kernel (one call instead of per-layer calls).
        if d1 > 0:
            self.img_prompts_stacked = jnp.stack(self.compound_prompts_image)
            self.comp_w_t_stacked = jnp.stack(self.comp_w_t)
            self.comp_b_stacked = jnp.stack(self.comp_b)
        else:
            self.img_prompts_stacked = None
            self.comp_w_t_stacked = None
            self.comp_b_stacked = None

        # Per-generation VMEM budget and class-block size for the prompt-assembly grid.
        capacity = _vmem_capacity_bytes()
        self.vmem_limit_bytes = _pick_vmem_limit(capacity)
        self.block_cls = (int(block_cls) if block_cls is not None
                          else _pick_block_cls(n_cls, seq_len, ctx_dim, self.vmem_limit_bytes))

    def __call__(self):
        prompts, shared_ctx, deep_stacked = fused_forward(
            self.prompts_base, self.ctx, self.proj_w_t, self.proj_b,
            self.img_prompts_stacked, self.comp_w_t_stacked, self.comp_b_stacked,
            block_cls=self.block_cls, vmem_limit_bytes=self.vmem_limit_bytes)
        d1 = self.compound_prompts_depth - 1
        text_deep_prompts = [deep_stacked[i] for i in range(d1)] if d1 > 0 else []
        return prompts, shared_ctx, text_deep_prompts, self.compound_prompts_image


# ----------------------------- reference check -----------------------------

def _reference_forward(m: MultiModalPromptLearnerPallas):
    ctx_b = jnp.broadcast_to(m.ctx[None], (m.n_cls, m.n_ctx, m.ctx_dim))
    prompts = jnp.concatenate([m.token_prefix, ctx_b, m.token_suffix], axis=1)
    shared_ctx = (jnp.dot(m.ctx.astype(jnp.float32), m.proj_w_t.astype(jnp.float32),
                          precision=jax.lax.Precision.HIGHEST)
                  + m.proj_b.astype(jnp.float32)).astype(jnp.bfloat16)
    deep = [jnp.dot(p, w, precision=jax.lax.Precision.HIGHEST) + b
            for p, w, b in zip(m.compound_prompts_image, m.comp_w_t, m.comp_b)]
    return prompts, shared_ctx, deep


def _check(m: MultiModalPromptLearnerPallas, seq_len: int, vis_dim: int):
    prompts, shared_ctx, text_deep_prompts, compound_prompts_image = m()
    jax.block_until_ready((prompts, shared_ctx, text_deep_prompts, compound_prompts_image))

    ref_prompts, ref_shared, ref_deep = _reference_forward(m)
    d1 = m.compound_prompts_depth - 1

    assert prompts.shape == (m.n_cls, seq_len, m.ctx_dim) and prompts.dtype == jnp.bfloat16
    assert shared_ctx.shape == (m.n_ctx, vis_dim) and shared_ctx.dtype == jnp.bfloat16
    assert len(text_deep_prompts) == d1
    assert all(t.shape == (m.n_ctx, m.ctx_dim) and t.dtype == jnp.float32
               for t in text_deep_prompts)
    assert len(compound_prompts_image) == d1

    assert jnp.array_equal(prompts.astype(jnp.float32), ref_prompts.astype(jnp.float32))
    assert jnp.allclose(shared_ctx.astype(jnp.float32), ref_shared.astype(jnp.float32),
                        atol=2e-2, rtol=2e-2)
    for a, b in zip(text_deep_prompts, ref_deep):
        assert jnp.allclose(a, b, atol=1e-4, rtol=1e-3)


if __name__ == "__main__":
    # Small, module-consistent shapes: n_cls classes, n_ctx context tokens,
    # ctx_dim text width, vis_dim visual width (stand-in for 768), seq_len token length.
    n_cls, n_ctx, ctx_dim, vis_dim, seq_len, depth = 4, 4, 128, 256, 16, 3
    learner = MultiModalPromptLearnerPallas(
        jax.random.PRNGKey(0),
        n_cls=n_cls, n_ctx=n_ctx, ctx_dim=ctx_dim, vis_dim=vis_dim,
        seq_len=seq_len, prompt_depth=depth)
    _check(learner, seq_len, vis_dim)

    # Second config: ragged last class block (n_cls=5, block_cls=2) and depth=1 (no deep prompts),
    # validating the cdiv/blocked-output masking path flagged in the review.
    n_cls2, n_ctx2, ctx_dim2, vis_dim2, seq_len2, depth2 = 5, 2, 128, 128, 16, 1
    learner2 = MultiModalPromptLearnerPallas(
        jax.random.PRNGKey(0),
        n_cls=n_cls2, n_ctx=n_ctx2, ctx_dim=ctx_dim2, vis_dim=vis_dim2,
        seq_len=seq_len2, prompt_depth=depth2, block_cls=2)
    _check(learner2, seq_len2, vis_dim2)

    print("KERNEL_OK")
</pallas_src>

<mosaic_0001>
module attributes {stable_mosaic.version = 11 : i64} {
  func.func @_assemble_kernel(%arg0: i32, %arg1: memref<4x16x128xbf16, #tpu.memory_space<vmem>>, %arg2: memref<16x128xbf16, #tpu.memory_space<vmem>>, %arg3: memref<4x16x128xbf16, #tpu.memory_space<vmem>>) attributes {dimension_semantics = [#tpu.dimension_semantics<parallel>], iteration_bounds = array<i64: 1>, scalar_prefetch = 0 : i64, scratch_operands = 0 : i64, tpu.core_type = #tpu.core_type<tc>, window_params = [{transform_indices = @transform_0, window_bounds = array<i64: 4, 16, 128>}, {pipeline_mode = #tpu.pipeline_mode<synchronous>, transform_indices = @transform_1, window_bounds = array<i64: 16, 128>}, {transform_indices = @transform_2, window_bounds = array<i64: 4, 16, 128>}]} {
    %c0 = arith.constant 0 : index
    %c0_0 = arith.constant 0 : index
    %c0_1 = arith.constant 0 : index
    %0 = vector.load %arg1[%c0, %c0_0, %c0_1] : memref<4x16x128xbf16, #tpu.memory_space<vmem>>, vector<4x16x128xbf16>
    %c0_2 = arith.constant 0 : index
    %c0_3 = arith.constant 0 : index
    %1 = vector.load %arg2[%c0_2, %c0_3] : memref<16x128xbf16, #tpu.memory_space<vmem>>, vector<16x128xbf16>
    %2 = vector.shape_cast %1 : vector<16x128xbf16> to vector<1x16x128xbf16>
    %3 = vector.broadcast %2 : vector<1x16x128xbf16> to vector<4x16x128xbf16>
    %4 = arith.addf %0, %3 : vector<4x16x128xbf16>
    %c0_4 = arith.constant 0 : index
    %c0_5 = arith.constant 0 : index
    %c0_6 = arith.constant 0 : index
    %5 = vector.load %arg3[%c0_4, %c0_5, %c0_6] : memref<4x16x128xbf16, #tpu.memory_space<vmem>>, vector<4x16x128xbf16>
    tpu.vector_store %arg3[%c0_4, %c0_5, %c0_6], %4 {strides = array<i32>} : memref<4x16x128xbf16, #tpu.memory_space<vmem>>, vector<4x16x128xbf16>,
    return
  }
  func.func @transform_0(%arg0: i32) -> (i32, i32, i32) {
    %c0_i32 = arith.constant 0 : i32
    %c0_i32_0 = arith.constant 0 : i32
    %c0_i32_1 = arith.constant 0 : i32
    return %arg0, %c0_i32, %c0_i32_0 : i32, i32, i32
  }
  func.func @transform_1(%arg0: i32) -> (i32, i32) {
    %c0_i32 = arith.constant 0 : i32
    %c0_i32_0 = arith.constant 0 : i32
    %c0_i32_1 = arith.constant 0 : i32
    return %c0_i32, %c0_i32_0 : i32, i32
  }
  func.func @transform_2(%arg0: i32) -> (i32, i32, i32) {
    %c0_i32 = arith.constant 0 : i32
    %c0_i32_0 = arith.constant 0 : i32
    %c0_i32_1 = arith.constant 0 : i32
    return %arg0, %c0_i32, %c0_i32_0 : i32, i32, i32
  }
}

module attributes {stable_mosaic.version = 11 : i64} {
  func.func @kernel(%arg0: i32, %arg1: memref<4x128xbf16, #tpu.memory_space<vmem>>, %arg2: memref<128x256xbf16, #tpu.memory_space<vmem>>, %arg3: memref<1x256xbf16, #tpu.memory_space<vmem>>, %arg4: memref<2x4x256xf32, #tpu.memory_space<vmem>>, %arg5: memref<2x256x128xf32, #tpu.memory_space<vmem>>, %arg6: memref<2x1x128xf32, #tpu.memory_space<vmem>>, %arg7: memref<4x256xbf16, #tpu.memory_space<vmem>>, %arg8: memref<2x4x128xf32, #tpu.memory_space<vmem>>) attributes {dimension_semantics = [#tpu.dimension_semantics<arbitrary>], iteration_bounds = array<i64: 1>, scalar_prefetch = 0 : i64, scratch_operands = 0 : i64, tpu.core_type = #tpu.core_type<tc>, window_params = [{pipeline_mode = #tpu.pipeline_mode<synchronous>, transform_indices = @transform_0, window_bounds = array<i64: 4, 128>}, {pipeline_mode = #tpu.pipeline_mode<synchronous>, transform_indices = @transform_1, window_bounds = array<i64: 128, 256>}, {pipeline_mode = #tpu.pipeline_mode<synchronous>, transform_indices = @transform_2, window_bounds = array<i64: 1, 256>}, {pipeline_mode = #tpu.pipeline_mode<synchronous>, transform_indices = @transform_3, window_bounds = array<i64: 2, 4, 256>}, {pipeline_mode = #tpu.pipeline_mode<synchronous>, transform_indices = @transform_4, window_bounds = array<i64: 2, 256, 128>}, {pipeline_mode = #tpu.pipeline_mode<synchronous>, transform_indices = @transform_5, window_bounds = array<i64: 2, 1, 128>}, {pipeline_mode = #tpu.pipeline_mode<synchronous>, transform_indices = @transform_6, window_bounds = array<i64: 4, 256>}, {pipeline_mode = #tpu.pipeline_mode<synchronous>, transform_indices = @transform_7, window_bounds = array<i64: 2, 4, 128>}]} {
    %c0 = arith.constant 0 : index
    %c0_0 = arith.constant 0 : index
    %0 = vector.load %arg1[%c0, %c0_0] : memref<4x128xbf16, #tpu.memory_space<vmem>>, vector<4x128xbf16>
    %c0_1 = arith.constant 0 : index
    %c0_2 = arith.constant 0 : index
    %1 = vector.load %arg2[%c0_1, %c0_2] : memref<128x256xbf16, #tpu.memory_space<vmem>>, vector<128x256xbf16>
    %cst = arith.constant dense<0.000000e+00> : vector<4x256xf32>
    %2 = tpu.matmul %0, %1, %cst {dimension_numbers = #tpu.dot_dimension_numbers<[1], [0], [0], [1], [0, 0, 1, 1], [], []>} : vector<4x128xbf16>, vector<128x256xbf16>, vector<4x256xf32> -> vector<4x256xf32>
    %c0_3 = arith.constant 0 : index
    %c0_4 = arith.constant 0 : index
    %3 = vector.load %arg3[%c0_3, %c0_4] : memref<1x256xbf16, #tpu.memory_space<vmem>>, vector<1x256xbf16>
    %4 = arith.extf %3 : vector<1x256xbf16> to vector<1x256xf32>
    %5 = vector.broadcast %4 : vector<1x256xf32> to vector<4x256xf32>
    %6 = arith.addf %2, %5 : vector<4x256xf32>
    %7 = arith.truncf %6 : vector<4x256xf32> to vector<4x256xbf16>
    %c0_5 = arith.constant 0 : index
    %c0_6 = arith.constant 0 : index
    %8 = vector.load %arg7[%c0_5, %c0_6] : memref<4x256xbf16, #tpu.memory_space<vmem>>, vector<4x256xbf16>
    tpu.vector_store %arg7[%c0_5, %c0_6], %7 {strides = array<i32>} : memref<4x256xbf16, #tpu.memory_space<vmem>>, vector<4x256xbf16>,
    %c0_7 = arith.constant 0 : index
    %c0_8 = arith.constant 0 : index
    %c0_9 = arith.constant 0 : index
    %9 = vector.load %arg4[%c0_7, %c0_8, %c0_9] : memref<2x4x256xf32, #tpu.memory_space<vmem>>, vector<1x4x256xf32>
    %10 = vector.shape_cast %9 : vector<1x4x256xf32> to vector<4x256xf32>
    %c0_10 = arith.constant 0 : index
    %c0_11 = arith.constant 0 : index
    %c0_12 = arith.constant 0 : index
    %11 = vector.load %arg5[%c0_10, %c0_11, %c0_12] : memref<2x256x128xf32, #tpu.memory_space<vmem>>, vector<1x256x128xf32>
    %12 = vector.shape_cast %11 : vector<1x256x128xf32> to vector<256x128xf32>
    %cst_13 = arith.constant dense<0.000000e+00> : vector<4x128xf32>
    %13 = tpu.matmul %10, %12, %cst_13 {dimension_numbers = #tpu.dot_dimension_numbers<[1], [0], [0], [1], [0, 0, 1, 1], [], []>} : vector<4x256xf32>, vector<256x128xf32>, vector<4x128xf32> -> vector<4x128xf32>
    %c0_14 = arith.constant 0 : index
    %c0_15 = arith.constant 0 : index
    %c0_16 = arith.constant 0 : index
    %14 = vector.load %arg6[%c0_14, %c0_15, %c0_16] : memref<2x1x128xf32, #tpu.memory_space<vmem>>, vector<1x1x128xf32>
    %15 = vector.shape_cast %14 : vector<1x1x128xf32> to vector<1x128xf32>
    %16 = vector.broadcast %15 : vector<1x128xf32> to vector<4x128xf32>
    %17 = arith.addf %13, %16 : vector<4x128xf32>
    %c0_17 = arith.constant 0 : index
    %c0_18 = arith.constant 0 : index
    %c0_19 = arith.constant 0 : index
    %18 = vector.load %arg8[%c0_17, %c0_18, %c0_19] : memref<2x4x128xf32, #tpu.memory_space<vmem>>, vector<1x4x128xf32>
    %19 = vector.shape_cast %18 : vector<1x4x128xf32> to vector<4x128xf32>
    %20 = vector.shape_cast %17 : vector<4x128xf32> to vector<1x4x128xf32>
    tpu.vector_store %arg8[%c0_17, %c0_18, %c0_19], %20 {strides = array<i32>} : memref<2x4x128xf32, #tpu.memory_space<vmem>>, vector<1x4x128xf32>,
    %c1 = arith.constant 1 : index
    %c0_20 = arith.constant 0 : index
    %c0_21 = arith.constant 0 : index
    %21 = vector.load %arg4[%c1, %c0_20, %c0_21] : memref<2x4x256xf32, #tpu.memory_space<vmem>>, vector<1x4x256xf32>
    %22 = vector.shape_cast %21 : vector<1x4x256xf32> to vector<4x256xf32>
    %c1_22 = arith.constant 1 : index
    %c0_23 = arith.constant 0 : index
    %c0_24 = arith.constant 0 : index
    %23 = vector.load %arg5[%c1_22, %c0_23, %c0_24] : memref<2x256x128xf32, #tpu.memory_space<vmem>>, vector<1x256x128xf32>
    %24 = vector.shape_cast %23 : vector<1x256x128xf32> to vector<256x128xf32>
    %cst_25 = arith.constant dense<0.000000e+00> : vector<4x128xf32>
    %25 = tpu.matmul %22, %24, %cst_25 {dimension_numbers = #tpu.dot_dimension_numbers<[1], [0], [0], [1], [0, 0, 1, 1], [], []>} : vector<4x256xf32>, vector<256x128xf32>, vector<4x128xf32> -> vector<4x128xf32>
    %c1_26 = arith.constant 1 : index
    %c0_27 = arith.constant 0 : index
    %c0_28 = arith.constant 0 : index
    %26 = vector.load %arg6[%c1_26, %c0_27, %c0_28] : memref<2x1x128xf32, #tpu.memory_space<vmem>>, vector<1x1x128xf32>
    %27 = vector.shape_cast %26 : vector<1x1x128xf32> to vector<1x128xf32>
    %28 = vector.broadcast %27 : vector<1x128xf32> to vector<4x128xf32>
    %29 = arith.addf %25, %28 : vector<4x128xf32>
    %c1_29 = arith.constant 1 : index
    %c0_30 = arith.constant 0 : index
    %c0_31 = arith.constant 0 : index
    %30 = vector.load %arg8[%c1_29, %c0_30, %c0_31] : memref<2x4x128xf32, #tpu.memory_space<vmem>>, vector<1x4x128xf32>
    %31 = vector.shape_cast %30 : vector<1x4x128xf32> to vector<4x128xf32>
    %32 = vector.shape_cast %29 : vector<4x128xf32> to vector<1x4x128xf32>
    tpu.vector_store %arg8[%c1_29, %c0_30, %c0_31], %32 {strides = array<i32>} : memref<2x4x128xf32, #tpu.memory_space<vmem>>, vector<1x4x128xf32>,
    return
  }
  func.func @transform_0(%arg0: i32) -> (i32, i32) {
    %c0_i32 = arith.constant 0 : i32
    %c0_i32_0 = arith.constant 0 : i32
    %c0_i32_1 = arith.constant 0 : i32
    return %c0_i32, %c0_i32_0 : i32, i32
  }
  func.func @transform_1(%arg0: i32) -> (i32, i32) {
    %c0_i32 = arith.constant 0 : i32
    %c0_i32_0 = arith.constant 0 : i32
    %c0_i32_1 = arith.constant 0 : i32
    return %c0_i32, %c0_i32_0 : i32, i32
  }
  func.func @transform_2(%arg0: i32) -> (i32, i32) {
    %c0_i32 = arith.constant 0 : i32
    %c0_i32_0 = arith.constant 0 : i32
    %c0_i32_1 = arith.constant 0 : i32
    return %c0_i32, %c0_i32_0 : i32, i32
  }
  func.func @transform_3(%arg0: i32) -> (i32, i32, i32) {
    %c0_i32 = arith.constant 0 : i32
    %c0_i32_0 = arith.constant 0 : i32
    %c0_i32_1 = arith.constant 0 : i32
    %c0_i32_2 = arith.constant 0 : i32
    return %c0_i32, %c0_i32_0, %c0_i32_1 : i32, i32, i32
  }
  func.func @transform_4(%arg0: i32) -> (i32, i32, i32) {
    %c0_i32 = arith.constant 0 : i32
    %c0_i32_0 = arith.constant 0 : i32
    %c0_i32_1 = arith.constant 0 : i32
    %c0_i32_2 = arith.constant 0 : i32
    return %c0_i32, %c0_i32_0, %c0_i32_1 : i32, i32, i32
  }
  func.func @transform_5(%arg0: i32) -> (i32, i32, i32) {
    %c0_i32 = arith.constant 0 : i32
    %c0_i32_0 = arith.constant 0 : i32
    %c0_i32_1 = arith.constant 0 : i32
    %c0_i32_2 = arith.constant 0 : i32
    return %c0_i32, %c0_i32_0, %c0_i32_1 : i32, i32, i32
  }
  func.func @transform_6(%arg0: i32) -> (i32, i32) {
    %c0_i32 = arith.constant 0 : i32
    %c0_i32_0 = arith.constant 0 : i32
    %c0_i32_1 = arith.constant 0 : i32
    return %c0_i32, %c0_i32_0 : i32, i32
  }
  func.func @transform_7(%arg0: i32) -> (i32, i32, i32) {
    %c0_i32 = arith.constant 0 : i32
    %c0_i32_0 = arith.constant 0 : i32
    %c0_i32_1 = arith.constant 0 : i32
    %c0_i32_2 = arith.constant 0 : i32
    return %c0_i32, %c0_i32_0, %c0_i32_1 : i32, i32, i32
  }
}

</mosaic_0001>

<llo_original>
// kernel: fused_forward.2
$region0: #{fused_forward.2}
  #allocation0 [shape = 'u32[]', space=smem, size = 0x4, offset = 0x4, fixed_abs, tag = 'smem constant byte address 0x4 - core index']
  #allocation1 [shape = 'u32[72,128]{1,0:T(1,128)}', space=vmem, size = 0x9000, scoped, tag = 'internal scratch']
  %s0 = inlined_call_operand.hbm [shape: bf16[4,16,128], index: 0, kind: input, shape index: {}]
  %s1 = inlined_call_operand.vmem [shape: bf16[16,128], index: 1, kind: input, shape index: {}]
  %s2 = inlined_call_operand.hbm [shape: bf16[4,16,128], index: 2, kind: output, shape index: {}]
  %s3 = sld [smem:[#allocation0]]
  $region22: #{fused_forward.2} parent=0
    _
  %s5 = ssub.s32 1, %s3
  %s6 = scalar_select 0, %s5, %s3
  $region1: #{fused_forward.2} parent=0
    #allocation2 [shape = 'u8[16384]{0}', space=vmem, size = 0x4000, scoped, tag = 'input window, operand 0, single buffered']
    #allocation3 [shape = 's32[1]{0}', space=sflag, size = 0x4, scoped, tag = 'scoped memory for fused_forward.2']
    #allocation4 [shape = 's32[1]{0}', space=sflag, size = 0x4, scoped, tag = 'scoped memory for fused_forward.2']
    #allocation5 [shape = 'u8[16384]{0}', space=vmem, size = 0x4000, scoped, tag = 'output window, operand 0, single buffered']
    %7 = vsyncpa [#allocation3], 0
    %8 = vsyncpa [#allocation4], 0
    // Predicated region
    $region2: #{fused_forward.2} parent=1 // pred_check
      _
    $region3: #{fused_forward.2} parent=1 // pred_check_branch
      %10 = sbr.rel (0) target = $region5
    $region4: #{fused_forward.2} parent=1 // pred_region
      %12 = vsyncadd [#allocation3], 0
      %s13 = sshll.u32 %s0, 4
      %s14 = int_to_ptr.hbm [resolvable:$true] %s13
      %s15 = sshll.u32 [#allocation2], 4
      %s16 = int_to_ptr.vmem [resolvable:$true] %s15
      %21 = dma.hbm_to_vmem [thread:$0]  %s14, 512, %s16, [#allocation3], 64, 64, 4
    $region5: #{fused_forward.2} parent=1 // pred_fallthru
      _
    // Predicated region
    $region6: #{fused_forward.2} parent=1 // pred_check
      _
    $region7: #{fused_forward.2} parent=1 // pred_check_branch
      %23 = sbr.rel (0) target = $region9
    $region8: #{fused_forward.2} parent=1 // pred_region
      _
    $region9: #{fused_forward.2} parent=1 // pred_fallthru
      _
    // Predicated region
    $region10: #{fused_forward.2} parent=1 // pred_check
      _
    $region11: #{fused_forward.2} parent=1 // pred_check_branch
      %25 = sbr.rel (0) target = $region13
    $region12: #{fused_forward.2} parent=1 // pred_region
      %27 = dma.done [#allocation3], 512
    $region13: #{fused_forward.2} parent=1 // pred_fallthru
      _
    %v28 = vld [vmem:[#allocation2] sm:$0xf]
    %v29 = vld [vmem:[#allocation2 + $0x4] sm:$0xf]
    %v30 = vld [vmem:[#allocation2 + $0x8] sm:$0xf]
    %v31 = vld [vmem:[#allocation2 + $0xc] sm:$0xf]
    %v32 = vld [vmem:[#allocation2 + $0x10] sm:$0xf]
    %v33 = vld [vmem:[#allocation2 + $0x14] sm:$0xf]
    %v34 = vld [vmem:[#allocation2 + $0x18] sm:$0xf]
    %v35 = vld [vmem:[#allocation2 + $0x1c] sm:$0xf]
    %v36 = vld [vmem:[%s1] sm:$0xf]
    %v37 = vld [vmem:[%s1 + $0x4] sm:$0xf]
    %v38 = vunpack.c.l.bf16 %v28
    %v39 = vunpack.c.l.bf16 %v29
    %v40 = vunpack.c.l.bf16 %v30
    %v41 = vunpack.c.l.bf16 %v31
    %v42 = vunpack.c.l.bf16 %v32
    %v43 = vunpack.c.l.bf16 %v33
    %v44 = vunpack.c.l.bf16 %v34
    %v45 = vunpack.c.l.bf16 %v35
    %v46 = vunpack.c.l.bf16 %v36
    %v47 = vunpack.c.l.bf16 %v37
    %v48 = vadd.f32 %v38, %v46
    %v49 = vadd.f32 %v39, %v47
    %v50 = vadd.f32 %v40, %v46
    %v51 = vadd.f32 %v41, %v47
    %v52 = vadd.f32 %v42, %v46
    %v53 = vadd.f32 %v43, %v47
    %v54 = vadd.f32 %v44, %v46
    %v55 = vadd.f32 %v45, %v47
    %v56 = vpack.c.bf16 %v48, %v48
    %v57 = vpack.c.bf16 %v49, %v49
    %v58 = vpack.c.bf16 %v50, %v50
    %v59 = vpack.c.bf16 %v51, %v51
    %v60 = vpack.c.bf16 %v52, %v52
    %v61 = vpack.c.bf16 %v53, %v53
    %v62 = vpack.c.bf16 %v54, %v54
    %v63 = vpack.c.bf16 %v55, %v55
    %64 = vst [vmem:[#allocation5] sm:$0xf] %v56
    %65 = vst [vmem:[#allocation5 + $0x4] sm:$0xf] %v57
    %66 = vst [vmem:[#allocation5 + $0x8] sm:$0xf] %v58
    %67 = vst [vmem:[#allocation5 + $0xc] sm:$0xf] %v59
    %68 = vst [vmem:[#allocation5 + $0x10] sm:$0xf] %v60
    %69 = vst [vmem:[#allocation5 + $0x14] sm:$0xf] %v61
    %70 = vst [vmem:[#allocation5 + $0x18] sm:$0xf] %v62
    %71 = vst [vmem:[#allocation5 + $0x1c] sm:$0xf] %v63
    // Predicated region
    $region14: #{fused_forward.2} parent=1 // pred_check
      _
    $region15: #{fused_forward.2} parent=1 // pred_check_branch
      %73 = sbr.rel (0) target = $region17
    $region16: #{fused_forward.2} parent=1 // pred_region
      %75 = vsyncadd [#allocation4], 0
      %s76 = sshll.u32 [#allocation5], 4
      %s77 = int_to_ptr.vmem [resolvable:$true] %s76
      %s78 = sshll.u32 %s2, 4
      %s79 = int_to_ptr.hbm [resolvable:$true] %s78
      %84 = dma.vmem_to_hbm [thread:$0]  %s77, 512, %s79, [#allocation4], 64, 64, 4
    $region17: #{fused_forward.2} parent=1 // pred_fallthru
      _
    // Predicated region
    $region18: #{fused_forward.2} parent=1 // pred_check
      _
    $region19: #{fused_forward.2} parent=1 // pred_check_branch
      %86 = sbr.rel (0) target = $region21
    $region20: #{fused_forward.2} parent=1 // pred_region
      %88 = dma.done [#allocation4], 512
    $region21: #{fused_forward.2} parent=1 // pred_fallthru
      _
    %89 = vsyncpa [#allocation3], 1
    %90 = vsyncpa [#allocation4], 1

// kernel: fused_forward.3
$region0: #{fused_forward.3}
  #allocation0 [shape = 'u32[]', space=smem, size = 0x4, offset = 0x4, fixed_abs, tag = 'smem constant byte address 0x4 - core index']
  #allocation1 [shape = 'u32[72,128]{1,0:T(1,128)}', space=vmem, size = 0x9000, scoped, tag = 'internal scratch']
  %s0 = inlined_call_operand.vmem [shape: bf16[4,128], index: 0, kind: input, shape index: {}]
  %s1 = inlined_call_operand.hbm [shape: bf16[128,256], index: 1, kind: input, shape index: {}]
  %s2 = inlined_call_operand.vmem [shape: bf16[1,256], index: 2, kind: input, shape index: {}]
  %s3 = inlined_call_operand.hbm [shape: f32[2,4,256], index: 3, kind: input, shape index: {}]
  %s4 = inlined_call_operand.hbm [shape: f32[2,256,128], index: 4, kind: input, shape index: {}]
  %s5 = inlined_call_operand.vmem [shape: f32[2,1,128], index: 5, kind: input, shape index: {}]
  %s6 = inlined_call_operand.hbm [shape: bf16[4,256], index: 6, kind: output, shape index: {0}]
  %s7 = inlined_call_operand.hbm [shape: f32[2,4,128], index: 7, kind: output, shape index: {1}]
  %8 = xla_tuple %s6, %s7
  %s9 = sld [smem:[#allocation0]]
  $region54: #{fused_forward.3} parent=0
    _
  %s11 = ssub.s32 1, %s9
  %s12 = scalar_select 0, %s11, %s9
  $region1: #{fused_forward.3} parent=0
    #allocation2 [shape = 'u8[65536]{0}', space=vmem, size = 0x10000, scoped, tag = 'input window, operand 1, single buffered']
    #allocation3 [shape = 's32[1]{0}', space=sflag, size = 0x4, scoped, tag = 'scoped memory for fused_forward.3']
    #allocation4 [shape = 's32[1]{0}', space=sflag, size = 0x4, scoped, tag = 'scoped memory for fused_forward.3']
    #allocation5 [shape = 'u8[8192]{0}', space=vmem, size = 0x2000, scoped, tag = 'input window, operand 3, single buffered']
    #allocation6 [shape = 's32[1]{0}', space=sflag, size = 0x4, scoped, tag = 'scoped memory for fused_forward.3']
    #allocation7 [shape = 'u8[262144]{0}', space=vmem, size = 0x40000, scoped, tag = 'input window, operand 4, single buffered']
    #allocation8 [shape = 'u8[2048]{0}', space=vmem, size = 0x800, scoped, tag = 'output window, operand 0, single buffered']
    #allocation9 [shape = 'u8[4096]{0}', space=vmem, size = 0x1000, scoped, tag = 'output window, operand 1, single buffered']
    #allocation10 [shape = 's32[1]{0}', space=sflag, size = 0x4, scoped, tag = 'scoped memory for fused_forward.3']
    %13 = vsyncpa [#allocation3], 0
    %14 = vsyncpa [#allocation6], 0
    %15 = vsyncpa [#allocation4], 0
    %16 = vsyncpa [#allocation10], 0
    // Predicated region
    $region2: #{fused_forward.3} parent=1 // pred_check
      _
    $region3: #{fused_forward.3} parent=1 // pred_check_branch
      %18 = sbr.rel (0) target = $region5
    $region4: #{fused_forward.3} parent=1 // pred_region
      _
    $region5: #{fused_forward.3} parent=1 // pred_fallthru
      _
    // Predicated region
    $region6: #{fused_forward.3} parent=1 // pred_check
      _
    $region7: #{fused_forward.3} parent=1 // pred_check_branch
      %20 = sbr.rel (0) target = $region9
    $region8: #{fused_forward.3} parent=1 // pred_region
      %22 = vsyncadd [#allocation3], 0
      %s23 = sshll.u32 %s1, 4
      %s24 = int_to_ptr.hbm [resolvable:$true] %s23
      %s25 = sshll.u32 [#allocation2], 4
      %s26 = int_to_ptr.vmem [resolvable:$true] %s25
      %31 = dma.hbm_to_vmem [thread:$0]  %s24, 2048, %s26, [#allocation3], 128, 128, 8
    $region9: #{fused_forward.3} parent=1 // pred_fallthru
      _
    // Predicated region
    $region10: #{fused_forward.3} parent=1 // pred_check
      _
    $region11: #{fused_forward.3} parent=1 // pred_check_branch
      %33 = sbr.rel (0) target = $region13
    $region12: #{fused_forward.3} parent=1 // pred_region
      _
    $region13: #{fused_forward.3} parent=1 // pred_fallthru
      _
    // Predicated region
    $region14: #{fused_forward.3} parent=1 // pred_check
      _
    $region15: #{fused_forward.3} parent=1 // pred_check_branch
      %35 = sbr.rel (0) target = $region17
    $region16: #{fused_forward.3} parent=1 // pred_region
      %37 = vsyncadd [#allocation6], 0
      %s38 = sshll.u32 %s3, 4
      %s39 = int_to_ptr.hbm [resolvable:$true] %s38
      %s40 = sshll.u32 [#allocation5], 4
      %s41 = int_to_ptr.vmem [resolvable:$true] %s40
      %46 = dma.hbm_to_vmem [thread:$0]  %s39, 256, %s41, [#allocation6], 128, 128, 8
    $region17: #{fused_forward.3} parent=1 // pred_fallthru
      _
    // Predicated region
    $region18: #{fused_forward.3} parent=1 // pred_check
      _
    $region19: #{fused_forward.3} parent=1 // pred_check_branch
      %48 = sbr.rel (0) target = $region21
    $region20: #{fused_forward.3} parent=1 // pred_region
      %50 = vsyncadd [#allocation6], 0
      %s51 = sshll.u32 %s4, 4
      %s52 = int_to_ptr.hbm [resolvable:$true] %s51
      %s53 = sshll.u32 [#allocation7], 4
      %s54 = int_to_ptr.vmem [resolvable:$true] %s53
      %59 = dma.hbm_to_vmem [thread:$0]  %s52, 8192, %s54, [#allocation6], 128, 128, 8
    $region21: #{fused_forward.3} parent=1 // pred_fallthru
      _
    // Predicated region
    $region22: #{fused_forward.3} parent=1 // pred_check
      _
    $region23: #{fused_forward.3} parent=1 // pred_check_branch
      %61 = sbr.rel (0) target = $region25
    $region24: #{fused_forward.3} parent=1 // pred_region
      _
    $region25: #{fused_forward.3} parent=1 // pred_fallthru
      _
    // Predicated region
    $region26: #{fused_forward.3} parent=1 // pred_check
      _
    $region27: #{fused_forward.3} parent=1 // pred_check_branch
      %63 = sbr.rel (0) target = $region29
    $region28: #{fused_forward.3} parent=1 // pred_region
      %65 = dma.done [#allocation3], 2048
    $region29: #{fused_forward.3} parent=1 // pred_fallthru
      _
    // Predicated region
    $region30: #{fused_forward.3} parent=1 // pred_check
      _
    $region31: #{fused_forward.3} parent=1 // pred_check_branch
      %67 = sbr.rel (0) target = $region33
    $region32: #{fused_forward.3} parent=1 // pred_region
      %69 = dma.done [#allocation6], 256
    $region33: #{fused_forward.3} parent=1 // pred_fallthru
      _
    // Predicated region
    $region34: #{fused_forward.3} parent=1 // pred_check
      _
    $region35: #{fused_forward.3} parent=1 // pred_check_branch
      %71 = sbr.rel (0) target = $region37
    $region36: #{fused_forward.3} parent=1 // pred_region
      %73 = dma.done [#allocation6], 8192
    $region37: #{fused_forward.3} parent=1 // pred_fallthru
      _
    %v74 = vld [vmem:[%s0] sm:$0x3]
    %v75 = vld [vmem:[#allocation2] sm:$0xff]
    %v76 = vld [vmem:[#allocation2 + $0x8] sm:$0xff]
    %v77 = vld [vmem:[#allocation2 + $0x10] sm:$0xff]
    %v78 = vld [vmem:[#allocation2 + $0x18] sm:$0xff]
    %v79 = vld [vmem:[#allocation2 + $0x20] sm:$0xff]
    %v80 = vld [vmem:[#allocation2 + $0x28] sm:$0xff]
    %v81 = vld [vmem:[#allocation2 + $0x30] sm:$0xff]
    %v82 = vld [vmem:[#allocation2 + $0x38] sm:$0xff]
    %v83 = vld [vmem:[#allocation2 + $0x40] sm:$0xff]
    %v84 = vld [vmem:[#allocation2 + $0x48] sm:$0xff]
    %v85 = vld [vmem:[#allocation2 + $0x50] sm:$0xff]
    %v86 = vld [vmem:[#allocation2 + $0x58] sm:$0xff]
    %v87 = vld [vmem:[#allocation2 + $0x60] sm:$0xff]
    %v88 = vld [vmem:[#allocation2 + $0x68] sm:$0xff]
    %v89 = vld [vmem:[#allocation2 + $0x70] sm:$0xff]
    %v90 = vld [vmem:[#allocation2 + $0x78] sm:$0xff]
    %v91 = vld [vmem:[%s2] sm:$0x3]
    %v92 = vunpack.c.l.bf16 %v91
    %v94 = vperm.slane %v92, 0
    %v95 = vperm.slane %v92, 2
    %v98 = vperm.slane %v94, 0
    %v99 = vperm.slane %v95, 0
    %v116 = vunpack.c.l.b16 %v75
    %v117 = vunpack.c.h.b16 %v75
    %v118 = vunpack.c.l.b16 %v76
    %v119 = vunpack.c.h.b16 %v76
    %v120 = vunpack.c.l.b16 %v77
    %v121 = vunpack.c.h.b16 %v77
    %v122 = vunpack.c.l.b16 %v78
    %v123 = vunpack.c.h.b16 %v78
    %v124 = vunpack.c.l.b16 %v79
    %v125 = vunpack.c.h.b16 %v79
    %v126 = vunpack.c.l.b16 %v80
    %v127 = vunpack.c.h.b16 %v80
    %v128 = vunpack.c.l.b16 %v81
    %v129 = vunpack.c.h.b16 %v81
    %v130 = vunpack.c.l.b16 %v82
    %v131 = vunpack.c.h.b16 %v82
    %v132 = vunpack.c.l.b16 %v83
    %v133 = vunpack.c.h.b16 %v83
    %v134 = vunpack.c.l.b16 %v84
    %v135 = vunpack.c.h.b16 %v84
    %v136 = vunpack.c.l.b16 %v85
    %v137 = vunpack.c.h.b16 %v85
    %v138 = vunpack.c.l.b16 %v86
    %v139 = vunpack.c.h.b16 %v86
    %v140 = vunpack.c.l.b16 %v87
    %v141 = vunpack.c.h.b16 %v87
    %v142 = vunpack.c.l.b16 %v88
    %v143 = vunpack.c.h.b16 %v88
    %v144 = vunpack.c.l.b16 %v89
    %v145 = vunpack.c.h.b16 %v89
    %v146 = vunpack.c.l.b16 %v90
    %v147 = vunpack.c.h.b16 %v90
    %v148 = vpack.c.b16 %v118, %v116
    %v149 = vpack.c.b16 %v119, %v117
    %v150 = vpack.c.b16 %v122, %v120
    %v151 = vpack.c.b16 %v123, %v121
    %v152 = vpack.c.b16 %v126, %v124
    %v153 = vpack.c.b16 %v127, %v125
    %v154 = vpack.c.b16 %v130, %v128
    %v155 = vpack.c.b16 %v131, %v129
    %v156 = vpack.c.b16 %v134, %v132
    %v157 = vpack.c.b16 %v135, %v133
    %v158 = vpack.c.b16 %v138, %v136
    %v159 = vpack.c.b16 %v139, %v137
    %v160 = vpack.c.b16 %v142, %v140
    %v161 = vpack.c.b16 %v143, %v141
    %v162 = vpack.c.b16 %v146, %v144
    %v163 = vpack.c.b16 %v147, %v145
    %180 = vmatpush.bf16.msra.mxu0 %v162
    %181 = vmatpush.bf16.msra.mxu0 %v160
    %182 = vmatpush.bf16.msra.mxu0 %v158
    %183 = vmatpush.bf16.msra.mxu0 %v156
    %184 = vmatpush.bf16.msra.mxu0 %v154
    %185 = vmatpush.bf16.msra.mxu0 %v152
    %186 = vmatpush.bf16.msra.mxu0 %v150
    %187 = vmatpush.bf16.msra.mxu0 %v148
    %188 = vmatmul.bf16.gmra.mxu0 %v74
    %v189 = vpop.f32.mrf.mxu0
    %v190 = vadd.f32 %v98, %v189
    %v191 = vpop.f32.mrf.mxu0
    %192 = vdwg.mxu0
    %193 = vmatpush.bf16.msra.mxu0 %v163
    %194 = vmatpush.bf16.msra.mxu0 %v161
    %195 = vmatpush.bf16.msra.mxu0 %v159
    %196 = vmatpush.bf16.msra.mxu0 %v157
    %197 = vmatpush.bf16.msra.mxu0 %v155
    %198 = vmatpush.bf16.msra.mxu0 %v153
    %199 = vmatpush.bf16.msra.mxu0 %v151
    %200 = vmatpush.bf16.msra.mxu0 %v149
    %201 = vmatmul.bf16.gmra.mxu0 %v74
    %v202 = vpop.f32.mrf.mxu0
    %v203 = vadd.f32 %v99, %v202
    %v204 = vpop.f32.mrf.mxu0
    %205 = vdwg.mxu0
    %v206 = vpack.c.bf16 %v203, %v190
    %v208 = vrot.slane %v206, 2
    %vm209 = vcmask 1041408
    %v212 = vsel %vm209, %v206, %v208
    %214 = vst [vmem:[#allocation8] sm:$0xf] %v212
    %v215 = vld [vmem:[#allocation5] sm:$0xff]
    %v216 = vld [vmem:[#allocation7] sm:$0xff]
    %v217 = vld [vmem:[#allocation7 + $0x8] sm:$0xff]
    %v218 = vld [vmem:[#allocation7 + $0x10] sm:$0xff]
    %v219 = vld [vmem:[#allocation7 + $0x18] sm:$0xff]
    %v220 = vld [vmem:[#allocation7 + $0x20] sm:$0xff]
    %v221 = vld [vmem:[#allocation7 + $0x28] sm:$0xff]
    %v222 = vld [vmem:[#allocation7 + $0x30] sm:$0xff]
    %v223 = vld [vmem:[#allocation7 + $0x38] sm:$0xff]
    %v224 = vld [vmem:[#allocation7 + $0x40] sm:$0xff]
    %v225 = vld [vmem:[#allocation7 + $0x48] sm:$0xff]
    %v226 = vld [vmem:[#allocation7 + $0x50] sm:$0xff]
    %v227 = vld [vmem:[#allocation7 + $0x58] sm:$0xff]
    %v228 = vld [vmem:[#allocation7 + $0x60] sm:$0xff]
    %v229 = vld [vmem:[#allocation7 + $0x68] sm:$0xff]
    %v230 = vld [vmem:[#allocation7 + $0x70] sm:$0xff]
    %v231 = vld [vmem:[#allocation7 + $0x78] sm:$0xff]
    %v232 = vld [vmem:[#allocation7 + $0x80] sm:$0xff]
    %v233 = vld [vmem:[#allocation7 + $0x88] sm:$0xff]
    %v234 = vld [vmem:[#allocation7 + $0x90] sm:$0xff]
    %v235 = vld [vmem:[#allocation7 + $0x98] sm:$0xff]
    %v236 = vld [vmem:[#allocation7 + $0xa0] sm:$0xff]
    %v237 = vld [vmem:[#allocation7 + $0xa8] sm:$0xff]
    %v238 = vld [vmem:[#allocation7 + $0xb0] sm:$0xff]
    %v239 = vld [vmem:[#allocation7 + $0xb8] sm:$0xff]
    %v240 = vld [vmem:[#allocation7 + $0xc0] sm:$0xff]
    %v241 = vld [vmem:[#allocation7 + $0xc8] sm:$0xff]
    %v242 = vld [vmem:[#allocation7 + $0xd0] sm:$0xff]
    %v243 = vld [vmem:[#allocation7 + $0xd8] sm:$0xff]
    %v244 = vld [vmem:[#allocation7 + $0xe0] sm:$0xff]
    %v245 = vld [vmem:[#allocation7 + $0xe8] sm:$0xff]
    %v246 = vld [vmem:[#allocation7 + $0xf0] sm:$0xff]
    %v247 = vld [vmem:[#allocation7 + $0xf8] sm:$0xff]
    %v248 = vld [vmem:[%s5] sm:$0x1]
    %v250 = vperm.slane %v248, 0
    %253 = vst [vmem:[#allocation1] ss:$2 sm:$0xff] %v215
    %v254 = vld.sshfl [vmem:[#allocation1] sm:$0xff pattern:$0x75316420]
    %v255 = vld.sshfl [vmem:[#allocation1 + $0x8] sm:$0xff pattern:$0x75316420]
    %258 = vmatpush.msra.mxu0 %v231
    %259 = vmatpush.msra.mxu0 %v230
    %260 = vmatpush.msra.mxu0 %v229
    %261 = vmatpush.msra.mxu0 %v228
    %262 = vmatpush.msra.mxu0 %v227
    %263 = vmatpush.msra.mxu0 %v226
    %264 = vmatpush.msra.mxu0 %v225
    %265 = vmatpush.msra.mxu0 %v224
    %266 = vmatpush.msra.mxu0 %v223
    %267 = vmatpush.msra.mxu0 %v222
    %268 = vmatpush.msra.mxu0 %v221
    %269 = vmatpush.msra.mxu0 %v220
    %270 = vmatpush.msra.mxu0 %v219
    %271 = vmatpush.msra.mxu0 %v218
    %272 = vmatpush.msra.mxu0 %v217
    %273 = vmatpush.msra.mxu0 %v216
    %274 = vmatmul.f32.gmra.mxu0 %v254
    %v275 = vpop.f32.mrf.mxu0
    %v276 = vadd.f32 %v250, %v275
    %277 = vdwg.mxu0
    %278 = vmatpush.msra.mxu0 %v247
    %279 = vmatpush.msra.mxu0 %v246
    %280 = vmatpush.msra.mxu0 %v245
    %281 = vmatpush.msra.mxu0 %v244
    %282 = vmatpush.msra.mxu0 %v243
    %283 = vmatpush.msra.mxu0 %v242
    %284 = vmatpush.msra.mxu0 %v241
    %285 = vmatpush.msra.mxu0 %v240
    %286 = vmatpush.msra.mxu0 %v239
    %287 = vmatpush.msra.mxu0 %v238
    %288 = vmatpush.msra.mxu0 %v237
    %289 = vmatpush.msra.mxu0 %v236
    %290 = vmatpush.msra.mxu0 %v235
    %291 = vmatpush.msra.mxu0 %v234
    %292 = vmatpush.msra.mxu0 %v233
    %293 = vmatpush.msra.mxu0 %v232
    %294 = vmatmul.f32.gmra.mxu0 %v255
    %v295 = vpop.f32.mrf.mxu0
    %v296 = vadd.f32 %v276, %v295
    %297 = vdwg.mxu0
    %298 = vst [vmem:[#allocation9] sm:$0xf] %v296
    %s299 = scalar_lea.vmem [#allocation5], 8
    %v300 = vld [vmem:[%s299] sm:$0xff]
    %s301 = scalar_lea.vmem [#allocation7], 256
    %v302 = vld [vmem:[%s301] sm:$0xff]
    %v303 = vld [vmem:[%s301 + $0x8] sm:$0xff]
    %v304 = vld [vmem:[%s301 + $0x10] sm:$0xff]
    %v305 = vld [vmem:[%s301 + $0x18] sm:$0xff]
    %v306 = vld [vmem:[%s301 + $0x20] sm:$0xff]
    %v307 = vld [vmem:[%s301 + $0x28] sm:$0xff]
    %v308 = vld [vmem:[%s301 + $0x30] sm:$0xff]
    %v309 = vld [vmem:[%s301 + $0x38] sm:$0xff]
    %v310 = vld [vmem:[%s301 + $0x40] sm:$0xff]
    %v311 = vld [vmem:[%s301 + $0x48] sm:$0xff]
    %v312 = vld [vmem:[%s301 + $0x50] sm:$0xff]
    %v313 = vld [vmem:[%s301 + $0x58] sm:$0xff]
    %v314 = vld [vmem:[%s301 + $0x60] sm:$0xff]
    %v315 = vld [vmem:[%s301 + $0x68] sm:$0xff]
    %v316 = vld [vmem:[%s301 + $0x70] sm:$0xff]
    %v317 = vld [vmem:[%s301 + $0x78] sm:$0xff]
    %v318 = vld [vmem:[%s301 + $0x80] sm:$0xff]
    %v319 = vld [vmem:[%s301 + $0x88] sm:$0xff]
    %v320 = vld [vmem:[%s301 + $0x90] sm:$0xff]
    %v321 = vld [vmem:[%s301 + $0x98] sm:$0xff]
    %v322 = vld [vmem:[%s301 + $0xa0] sm:$0xff]
    %v323 = vld [vmem:[%s301 + $0xa8] sm:$0xff]
    %v324 = vld [vmem:[%s301 + $0xb0] sm:$0xff]
    %v325 = vld [vmem:[%s301 + $0xb8] sm:$0xff]
    %v326 = vld [vmem:[%s301 + $0xc0] sm:$0xff]
    %v327 = vld [vmem:[%s301 + $0xc8] sm:$0xff]
    %v328 = vld [vmem:[%s301 + $0xd0] sm:$0xff]
    %v329 = vld [vmem:[%s301 + $0xd8] sm:$0xff]
    %v330 = vld [vmem:[%s301 + $0xe0] sm:$0xff]
    %v331 = vld [vmem:[%s301 + $0xe8] sm:$0xff]
    %v332 = vld [vmem:[%s301 + $0xf0] sm:$0xff]
    %v333 = vld [vmem:[%s301 + $0xf8] sm:$0xff]
    %s334 = scalar_lea.vmem %s5, 1
    %v335 = vld [vmem:[%s334] sm:$0x1]
    %v337 = vperm.slane %v335, 0
    %340 = vst [vmem:[#allocation1] ss:$2 sm:$0xff] %v300
    %v341 = vld.sshfl [vmem:[#allocation1] sm:$0xff pattern:$0x75316420]
    %v342 = vld.sshfl [vmem:[#allocation1 + $0x8] sm:$0xff pattern:$0x75316420]
    %345 = vmatpush.msra.mxu0 %v317
    %346 = vmatpush.msra.mxu0 %v316
    %347 = vmatpush.msra.mxu0 %v315
    %348 = vmatpush.msra.mxu0 %v314
    %349 = vmatpush.msra.mxu0 %v313
    %350 = vmatpush.msra.mxu0 %v312
    %351 = vmatpush.msra.mxu0 %v311
    %352 = vmatpush.msra.mxu0 %v310
    %353 = vmatpush.msra.mxu0 %v309
    %354 = vmatpush.msra.mxu0 %v308
    %355 = vmatpush.msra.mxu0 %v307
    %356 = vmatpush.msra.mxu0 %v306
    %357 = vmatpush.msra.mxu0 %v305
    %358 = vmatpush.msra.mxu0 %v304
    %359 = vmatpush.msra.mxu0 %v303
    %360 = vmatpush.msra.mxu0 %v302
    %361 = vmatmul.f32.gmra.mxu0 %v341
    %v362 = vpop.f32.mrf.mxu0
    %v363 = vadd.f32 %v337, %v362
    %364 = vdwg.mxu0
    %365 = vmatpush.msra.mxu0 %v333
    %366 = vmatpush.msra.mxu0 %v332
    %367 = vmatpush.msra.mxu0 %v331
    %368 = vmatpush.msra.mxu0 %v330
    %369 = vmatpush.msra.mxu0 %v329
    %370 = vmatpush.msra.mxu0 %v328
    %371 = vmatpush.msra.mxu0 %v327
    %372 = vmatpush.msra.mxu0 %v326
    %373 = vmatpush.msra.mxu0 %v325
    %374 = vmatpush.msra.mxu0 %v324
    %375 = vmatpush.msra.mxu0 %v323
    %376 = vmatpush.msra.mxu0 %v322
    %377 = vmatpush.msra.mxu0 %v321
    %378 = vmatpush.msra.mxu0 %v320
    %379 = vmatpush.msra.mxu0 %v319
    %380 = vmatpush.msra.mxu0 %v318
    %381 = vmatmul.f32.gmra.mxu0 %v342
    %v382 = vpop.f32.mrf.mxu0
    %v383 = vadd.f32 %v363, %v382
    %384 = vdwg.mxu0
    %s385 = scalar_lea.vmem [#allocation9], 4
    %386 = vst [vmem:[%s385] sm:$0xf] %v383
    // Predicated region
    $region38: #{fused_forward.3} parent=1 // pred_check
      _
    $region39: #{fused_forward.3} parent=1 // pred_check_branch
      %388 = sbr.rel (0) target = $region41
    $region40: #{fused_forward.3} parent=1 // pred_region
      %390 = vsyncadd [#allocation4], 0
      %s392 = sshll.u32 [#allocation8], 4
      %s393 = int_to_ptr.vmem [resolvable:$true] %s392
      %s394 = sshll.u32 %s6, 4
      %s395 = int_to_ptr.hbm [resolvable:$true] %s394
      %397 = dma.vmem_to_hbm [thread:$0]  %s393, 64, %s395, [#allocation4]
    $region41: #{fused_forward.3} parent=1 // pred_fallthru
      _
    // Predicated region
    $region42: #{fused_forward.3} parent=1 // pred_check
      _
    $region43: #{fused_forward.3} parent=1 // pred_check_branch
      %399 = sbr.rel (0) target = $region45
    $region44: #{fused_forward.3} parent=1 // pred_region
      %401 = vsyncadd [#allocation10], 0
      %s402 = sshll.u32 [#allocation9], 4
      %s403 = int_to_ptr.vmem [resolvable:$true] %s402
      %s404 = sshll.u32 %s7, 4
      %s405 = int_to_ptr.hbm [resolvable:$true] %s404
      %410 = dma.vmem_to_hbm [thread:$0]  %s403, 128, %s405, [#allocation10], 64, 64, 4
    $region45: #{fused_forward.3} parent=1 // pred_fallthru
      _
    // Predicated region
    $region46: #{fused_forward.3} parent=1 // pred_check
      _
    $region47: #{fused_forward.3} parent=1 // pred_check_branch
      %412 = sbr.rel (0) target = $region49
    $region48: #{fused_forward.3} parent=1 // pred_region
      %414 = dma.done [#allocation4], 64
    $region49: #{fused_forward.3} parent=1 // pred_fallthru
      _
    // Predicated region
    $region50: #{fused_forward.3} parent=1 // pred_check
      _
    $region51: #{fused_forward.3} parent=1 // pred_check_branch
      %416 = sbr.rel (0) target = $region53
    $region52: #{fused_forward.3} parent=1 // pred_region
      %418 = dma.done [#allocation10], 128
    $region53: #{fused_forward.3} parent=1 // pred_fallthru
      _
    %419 = vsyncpa [#allocation3], 1
    %420 = vsyncpa [#allocation6], 1
    %421 = vsyncpa [#allocation4], 1
    %422 = vsyncpa [#allocation10], 1

</llo_original>
